<compile_context>
chip_gen: v6e
topology: v6e:2x2x1
jax: 0.10.0
libtpu: 0.0.40
codegen_flags: <defaults>
</compile_context>

<pallas_src>
import functools

import jax
import jax.numpy as jnp
from jax.experimental import pallas as pl
from jax.experimental.pallas import tpu as pltpu

ALPHA = 0.1   # LeakyReLU negative slope (module default alpha=0.1)
EPS = 1e-5    # BatchNorm2d default eps


def _round_up(x, m):
    return (x + m - 1) // m * m


def _vmem_limit_bytes():
    """64 MiB on v5e/v6e (128 MiB physical), 48 MiB on v7x (64 MiB physical)."""
    try:
        phys = int(pltpu.get_tpu_info().vmem_capacity_bytes)
    except Exception:
        phys = 64 * 1024 * 1024                       # conservative (v7x) fallback
    return int(min(max(phys - 16 * 1024 * 1024, 32 * 1024 * 1024), 64 * 1024 * 1024))


_VMEM_LIMIT = _vmem_limit_bytes()


def _const_spec(block_shape, index_map):
    """Spec for a grid-invariant block: request a single VMEM buffer (the block
    is never re-fetched, so a second pipeline buffer is pure VMEM waste)."""
    try:
        return pl.BlockSpec(block_shape, index_map, pipeline_mode=pl.Buffered(1))
    except Exception:   # pipeline_mode / Buffered unavailable -> default 2 buffers
        return pl.BlockSpec(block_shape, index_map)


def _pick_tile(hw, kk_pad, cout_pad, tile_cap, vmem_budget):
    """Largest row tile that fits the pass-1 VMEM budget and minimizes padding."""
    best_key, best_t = None, 128
    for t in (512, 384, 256, 128):
        if t > max(128, tile_cap):
            continue
        need = (2 * kk_pad * t * 2            # 2 x patch buffers (bf16)
                + cout_pad * kk_pad * 2       # 1 x weight buffer (Buffered(1), bf16)
                + 2 * cout_pad * t * 4        # 2 x conv-stash buffers (f32)
                + 4 * cout_pad * 4            # stats accumulators
                + (1 << 20))                  # slack
        if need > vmem_budget:
            continue
        key = (_round_up(hw, t) - hw, -t)     # min padding waste, then biggest tile
        if best_key is None or key < best_key:
            best_key, best_t = key, t
    return best_t


# ---------------------------------------------------------------------------
# Pass 1: conv tile (channel-major, f32) + per-image per-channel sum / ssq.
# The conv bias is a per-channel constant and cancels exactly under
# training-mode BatchNorm, so it is never added.
# ---------------------------------------------------------------------------
def _conv_stats_kernel(p_ref, w_ref, conv_ref, sum_ref, ssq_ref):
    @pl.when(pl.program_id(1) == 0)
    def _():
        sum_ref[...] = jnp.zeros_like(sum_ref)
        ssq_ref[...] = jnp.zeros_like(ssq_ref)

    # (cout_pad, kk_pad) @ (kk_pad, tile) -> (cout_pad, tile), f32 accumulation.
    conv = jnp.dot(w_ref[...], p_ref[0], preferred_element_type=jnp.float32)
    conv_ref[0] = conv.astype(conv_ref.dtype)
    # Padded kk rows / padded hw columns are exactly zero -> contribute 0.
    sum_ref[...] += jnp.sum(conv, axis=1, keepdims=True)[None]
    ssq_ref[...] += jnp.sum(conv * conv, axis=1, keepdims=True)[None]


# ---------------------------------------------------------------------------
# Pass 2: stashed conv tile -> folded BatchNorm affine -> LeakyReLU.  Only the
# real output channels are written; output is already channel-major so the
# HBM result reshapes straight to NCHW.
# ---------------------------------------------------------------------------
def _apply_kernel(conv_ref, scale_ref, shift_ref, out_ref):
    cout = out_ref.shape[1]                              # static
    y = conv_ref[0].astype(jnp.float32) * scale_ref[...] + shift_ref[...]
    y = jnp.where(y > 0, y, ALPHA * y)                   # LeakyReLU (f32)
    out_ref[0] = y[:cout, :].astype(out_ref.dtype)


def _im2col_khw(x_nchw, k, stride, padding):
    """NCHW input -> per-image patch matrix (N, K*K*Cin, Hout*Wout), bf16.

    Patch rows are ordered (kh, kw, cin); built from NCHW slices + a channel-
    axis concatenate so the lane (last) axis is spatial and no large transpose
    of the patch tensor is ever materialized.
    """
    n, cin, h, w = x_nchw.shape
    x = x_nchw.astype(jnp.bfloat16)                      # bf16 BEFORE taps
    xp = jnp.pad(x, ((0, 0), (0, 0), (padding, padding), (padding, padding)))
    hout = (h + 2 * padding - k) // stride + 1
    wout = (w + 2 * padding - k) // stride + 1
    taps = []
    for kh in range(k):
        for kw in range(k):
            taps.append(xp[:, :, kh:kh + stride * hout:stride,
                               kw:kw + stride * wout:stride])
    patches = jnp.concatenate(taps, axis=1)              # (N, K*K*Cin, Hout, Wout)
    return patches.reshape(n, k * k * cin, hout * wout), hout, wout


@functools.partial(jax.jit, static_argnames=("stride", "padding", "tile_hw"))
def conv_layer_forward(x, weight, bias, gamma, beta, *,
                       stride=1, padding=None, tile_hw=512):
    del bias  # cancels exactly under training-mode BatchNorm
    n, cin, h, w = x.shape
    cout, _, k, _ = weight.shape
    if padding is None:
        padding = k // 2

    patches, hout, wout = _im2col_khw(x, k, stride, padding)
    hw = hout * wout
    kk = cin * k * k

    # ---- pad to layout-friendly sizes (kk/cout are sublane axes -> 16) -----
    kk_pad = _round_up(kk, 16)
    cout_pad = _round_up(cout, 16)
    tile = _pick_tile(hw, kk_pad, cout_pad, tile_hw, int(_VMEM_LIMIT * 0.8))
    hw_pad = _round_up(hw, tile)
    hw_tiles = hw_pad // tile

    patches = jnp.pad(patches, ((0, 0), (0, kk_pad - kk), (0, hw_pad - hw)))

    # Weight flattened in matching (kh, kw, cin) row order, channel-major.
    w2t = jnp.transpose(weight, (0, 2, 3, 1)).reshape(cout, kk)
    w2t = jnp.pad(w2t, ((0, cout_pad - cout), (0, kk_pad - kk))).astype(jnp.bfloat16)

    flops1 = 2 * n * hw_pad * kk_pad * cout_pad
    patch_bytes = patches.size * 2
    w_bytes = w2t.size * 2
    stash_bytes = n * cout_pad * hw_pad * 4

    # ---- pass 1: conv (stashed channel-major) + per-image batch statistics --
    conv_p, s_sum, s_ssq = pl.pallas_call(
        _conv_stats_kernel,
        out_shape=(jax.ShapeDtypeStruct((n, cout_pad, hw_pad), jnp.float32),
                   jax.ShapeDtypeStruct((n, cout_pad, 1), jnp.float32),
                   jax.ShapeDtypeStruct((n, cout_pad, 1), jnp.float32)),
        grid=(n, hw_tiles),
        in_specs=[
            pl.BlockSpec((1, kk_pad, tile), lambda i, j: (i, 0, j)),
            _const_spec((cout_pad, kk_pad), lambda i, j: (0, 0)),
        ],
        out_specs=(
            pl.BlockSpec((1, cout_pad, tile), lambda i, j: (i, 0, j)),
            pl.BlockSpec((1, cout_pad, 1), lambda i, j: (i, 0, 0)),
            pl.BlockSpec((1, cout_pad, 1), lambda i, j: (i, 0, 0)),
        ),
        compiler_params=pltpu.CompilerParams(
            # batch axis parallel (2 TCs on v7x); hw axis carries the resident
            # per-image stats accumulators -> arbitrary.
            dimension_semantics=("parallel", "arbitrary"),
            vmem_limit_bytes=_VMEM_LIMIT),
        cost_estimate=pl.CostEstimate(
            flops=flops1, transcendentals=0,
            bytes_accessed=patch_bytes + w_bytes + stash_bytes
                           + 2 * 4 * n * cout_pad),
    )(patches, w2t)

    # ---- fold BN (training-mode batch stats) into per-channel scale/shift ---
    count = float(n * hw)                                # real rows only
    mean_c = jnp.sum(s_sum, axis=0) / count              # (cout_pad, 1)
    # NOTE: E[X^2]-E[X]^2 in f32; fine here.  Switch to a centered / Welford
    # pass if layers with |mean| >> std show up.
    var = jnp.maximum(jnp.sum(s_ssq, axis=0) / count - mean_c * mean_c, 0.0)
    g_col = jnp.pad(gamma.astype(jnp.float32), (0, cout_pad - cout)).reshape(cout_pad, 1)
    b_col = jnp.pad(beta.astype(jnp.float32), (0, cout_pad - cout)).reshape(cout_pad, 1)
    scale = g_col * jax.lax.rsqrt(var + EPS)
    shift = b_col - mean_c * scale

    # ---- pass 2: affine + LeakyReLU on the stashed conv (no matmul) ---------
    out_p = pl.pallas_call(
        _apply_kernel,
        out_shape=jax.ShapeDtypeStruct((n, cout, hw_pad), jnp.float32),
        grid=(n, hw_tiles),
        in_specs=[
            pl.BlockSpec((1, cout_pad, tile), lambda i, j: (i, 0, j)),
            _const_spec((cout_pad, 1), lambda i, j: (0, 0)),
            _const_spec((cout_pad, 1), lambda i, j: (0, 0)),
        ],
        out_specs=pl.BlockSpec((1, cout, tile), lambda i, j: (i, 0, j)),
        compiler_params=pltpu.CompilerParams(
            dimension_semantics=("parallel", "parallel"),
            vmem_limit_bytes=_VMEM_LIMIT),
        cost_estimate=pl.CostEstimate(
            flops=4 * n * hw_pad * cout_pad, transcendentals=0,
            bytes_accessed=stash_bytes + n * cout * hw_pad * 4),
    )(conv_p, scale, shift)

    # Already channel-major with only real channels: drop hw padding (no-op
    # when hw_pad == hw) and reshape to NCHW.
    return out_p[:, :, :hw].reshape(n, cout, hout, wout)


def _reference(x, weight, bias, gamma, beta, stride=1, padding=1):
    conv = jax.lax.conv_general_dilated(
        x, weight, (stride, stride), ((padding, padding), (padding, padding)),
        dimension_numbers=("NCHW", "OIHW", "NCHW"))
    conv = conv + bias.reshape(1, -1, 1, 1)
    mean = conv.mean(axis=(0, 2, 3), keepdims=True)
    var = ((conv - mean) ** 2).mean(axis=(0, 2, 3), keepdims=True)
    y = (conv - mean) * jax.lax.rsqrt(var + EPS)
    y = y * gamma.reshape(1, -1, 1, 1) + beta.reshape(1, -1, 1, 1)
    return jnp.where(y > 0, y, ALPHA * y)


if __name__ == "__main__":
    key = jax.random.PRNGKey(0)
    kx, kw, kb = jax.random.split(key, 3)

    N, CIN, COUT, H, W, K = 2, 4, 8, 16, 16, 3

    x = jax.random.normal(kx, (N, CIN, H, W), dtype=jnp.float32)
    # Deterministic synthetic parameters (shapes per nn.Conv2d / nn.BatchNorm2d):
    weight = jax.random.normal(kw, (COUT, CIN, K, K), dtype=jnp.float32) * 0.1
    bias = jax.random.normal(kb, (COUT,), dtype=jnp.float32) * 0.1
    gamma = jnp.ones((COUT,), dtype=jnp.float32)   # BN weight default
    beta = jnp.zeros((COUT,), dtype=jnp.float32)   # BN bias default

    # tile_hw=128 -> 2 row tiles per image (grid (2, 2)) so the tiled two-pass
    # BatchNorm accumulation is exercised at this toy size.
    out = conv_layer_forward(x, weight, bias, gamma, beta,
                             stride=1, padding=None, tile_hw=128)
    out = jax.block_until_ready(out)

    ref = _reference(x, weight, bias, gamma, beta, stride=1, padding=K // 2)
    assert out.shape == (N, COUT, H, W)
    # bf16 MXU operands (f32 accumulation, f32 conv stash, f32 BN math).
    assert jnp.allclose(out, ref, atol=3e-2, rtol=3e-2), "mismatch vs JAX reference"

    print("KERNEL_OK")
</pallas_src>

<mosaic_0001>
module attributes {stable_mosaic.version = 11 : i64} {
  func.func @_conv_stats_kernel(%arg0: i32, %arg1: i32, %arg2: memref<1x48x128xbf16, #tpu.memory_space<vmem>>, %arg3: memref<16x48xbf16, #tpu.memory_space<vmem>>, %arg4: memref<1x16x128xf32, #tpu.memory_space<vmem>>, %arg5: memref<1x16x1xf32, #tpu.memory_space<vmem>>, %arg6: memref<1x16x1xf32, #tpu.memory_space<vmem>>) attributes {dimension_semantics = [#tpu.dimension_semantics<parallel>, #tpu.dimension_semantics<arbitrary>], iteration_bounds = array<i64: 2, 2>, scalar_prefetch = 0 : i64, scratch_operands = 0 : i64, tpu.core_type = #tpu.core_type<tc>, window_params = [{transform_indices = @transform_0, window_bounds = array<i64: 1, 48, 128>}, {pipeline_mode = #tpu.pipeline_mode<synchronous>, transform_indices = @transform_1, window_bounds = array<i64: 16, 48>}, {transform_indices = @transform_2, window_bounds = array<i64: 1, 16, 128>}, {transform_indices = @transform_3, window_bounds = array<i64: 1, 16, 1>}, {transform_indices = @transform_4, window_bounds = array<i64: 1, 16, 1>}]} {
    %c0_i32 = arith.constant 0 : i32
    %0 = arith.cmpi eq, %arg1, %c0_i32 : i32
    %1 = arith.extui %0 : i1 to i32
    %c0_i32_0 = arith.constant 0 : i32
    %2 = arith.cmpi ne, %1, %c0_i32_0 : i32
    scf.if %2 {
      %cst_22 = arith.constant 0.000000e+00 : f32
      %23 = vector.broadcast %cst_22 : f32 to vector<1x16x1xf32>
      %c0_23 = arith.constant 0 : index
      %c0_24 = arith.constant 0 : index
      %c0_25 = arith.constant 0 : index
      %24 = vector.load %arg5[%c0_23, %c0_24, %c0_25] : memref<1x16x1xf32, #tpu.memory_space<vmem>>, vector<1x16x1xf32>
      tpu.vector_store %arg5[%c0_23, %c0_24, %c0_25], %23 {strides = array<i32>} : memref<1x16x1xf32, #tpu.memory_space<vmem>>, vector<1x16x1xf32>,
      %cst_26 = arith.constant 0.000000e+00 : f32
      %25 = vector.broadcast %cst_26 : f32 to vector<1x16x1xf32>
      %c0_27 = arith.constant 0 : index
      %c0_28 = arith.constant 0 : index
      %c0_29 = arith.constant 0 : index
      %26 = vector.load %arg6[%c0_27, %c0_28, %c0_29] : memref<1x16x1xf32, #tpu.memory_space<vmem>>, vector<1x16x1xf32>
      tpu.vector_store %arg6[%c0_27, %c0_28, %c0_29], %25 {strides = array<i32>} : memref<1x16x1xf32, #tpu.memory_space<vmem>>, vector<1x16x1xf32>,
    } else {
    }
    %c0 = arith.constant 0 : index
    %c0_1 = arith.constant 0 : index
    %3 = vector.load %arg3[%c0, %c0_1] : memref<16x48xbf16, #tpu.memory_space<vmem>>, vector<16x48xbf16>
    %c0_2 = arith.constant 0 : index
    %c0_3 = arith.constant 0 : index
    %c0_4 = arith.constant 0 : index
    %4 = vector.load %arg2[%c0_2, %c0_3, %c0_4] : memref<1x48x128xbf16, #tpu.memory_space<vmem>>, vector<1x48x128xbf16>
    %5 = vector.shape_cast %4 : vector<1x48x128xbf16> to vector<48x128xbf16>
    %cst = arith.constant dense<0.000000e+00> : vector<16x128xf32>
    %6 = tpu.matmul %3, %5, %cst {dimension_numbers = #tpu.dot_dimension_numbers<[1], [0], [0], [1], [0, 0, 1, 1], [], []>} : vector<16x48xbf16>, vector<48x128xbf16>, vector<16x128xf32> -> vector<16x128xf32>
    %c0_5 = arith.constant 0 : index
    %c0_6 = arith.constant 0 : index
    %c0_7 = arith.constant 0 : index
    %7 = vector.load %arg4[%c0_5, %c0_6, %c0_7] : memref<1x16x128xf32, #tpu.memory_space<vmem>>, vector<1x16x128xf32>
    %8 = vector.shape_cast %7 : vector<1x16x128xf32> to vector<16x128xf32>
    %9 = vector.shape_cast %6 : vector<16x128xf32> to vector<1x16x128xf32>
    tpu.vector_store %arg4[%c0_5, %c0_6, %c0_7], %9 {strides = array<i32>} : memref<1x16x128xf32, #tpu.memory_space<vmem>>, vector<1x16x128xf32>,
    %c0_8 = arith.constant 0 : index
    %c0_9 = arith.constant 0 : index
    %c0_10 = arith.constant 0 : index
    %10 = vector.load %arg5[%c0_8, %c0_9, %c0_10] : memref<1x16x1xf32, #tpu.memory_space<vmem>>, vector<1x16x1xf32>
    %cst_11 = arith.constant dense<0.000000e+00> : vector<16xf32>
    %11 = vector.multi_reduction <add>, %6, %cst_11 [1] : vector<16x128xf32> to vector<16xf32>
    %12 = vector.shape_cast %11 : vector<16xf32> to vector<16x1xf32>
    %13 = vector.shape_cast %12 : vector<16x1xf32> to vector<1x16x1xf32>
    %14 = arith.addf %10, %13 : vector<1x16x1xf32>
    %c0_12 = arith.constant 0 : index
    %c0_13 = arith.constant 0 : index
    %c0_14 = arith.constant 0 : index
    %15 = vector.load %arg5[%c0_12, %c0_13, %c0_14] : memref<1x16x1xf32, #tpu.memory_space<vmem>>, vector<1x16x1xf32>
    tpu.vector_store %arg5[%c0_12, %c0_13, %c0_14], %14 {strides = array<i32>} : memref<1x16x1xf32, #tpu.memory_space<vmem>>, vector<1x16x1xf32>,
    %c0_15 = arith.constant 0 : index
    %c0_16 = arith.constant 0 : index
    %c0_17 = arith.constant 0 : index
    %16 = vector.load %arg6[%c0_15, %c0_16, %c0_17] : memref<1x16x1xf32, #tpu.memory_space<vmem>>, vector<1x16x1xf32>
    %17 = arith.mulf %6, %6 : vector<16x128xf32>
    %cst_18 = arith.constant dense<0.000000e+00> : vector<16xf32>
    %18 = vector.multi_reduction <add>, %17, %cst_18 [1] : vector<16x128xf32> to vector<16xf32>
    %19 = vector.shape_cast %18 : vector<16xf32> to vector<16x1xf32>
    %20 = vector.shape_cast %19 : vector<16x1xf32> to vector<1x16x1xf32>
    %21 = arith.addf %16, %20 : vector<1x16x1xf32>
    %c0_19 = arith.constant 0 : index
    %c0_20 = arith.constant 0 : index
    %c0_21 = arith.constant 0 : index
    %22 = vector.load %arg6[%c0_19, %c0_20, %c0_21] : memref<1x16x1xf32, #tpu.memory_space<vmem>>, vector<1x16x1xf32>
    tpu.vector_store %arg6[%c0_19, %c0_20, %c0_21], %21 {strides = array<i32>} : memref<1x16x1xf32, #tpu.memory_space<vmem>>, vector<1x16x1xf32>,
    return
  }
  func.func @transform_0(%arg0: i32, %arg1: i32) -> (i32, i32, i32) {
    %c0_i32 = arith.constant 0 : i32
    %c0_i32_0 = arith.constant 0 : i32
    return %arg0, %c0_i32, %arg1 : i32, i32, i32
  }
  func.func @transform_1(%arg0: i32, %arg1: i32) -> (i32, i32) {
    %c0_i32 = arith.constant 0 : i32
    %c0_i32_0 = arith.constant 0 : i32
    %c0_i32_1 = arith.constant 0 : i32
    return %c0_i32, %c0_i32_0 : i32, i32
  }
  func.func @transform_2(%arg0: i32, %arg1: i32) -> (i32, i32, i32) {
    %c0_i32 = arith.constant 0 : i32
    %c0_i32_0 = arith.constant 0 : i32
    return %arg0, %c0_i32, %arg1 : i32, i32, i32
  }
  func.func @transform_3(%arg0: i32, %arg1: i32) -> (i32, i32, i32) {
    %c0_i32 = arith.constant 0 : i32
    %c0_i32_0 = arith.constant 0 : i32
    %c0_i32_1 = arith.constant 0 : i32
    return %arg0, %c0_i32, %c0_i32_0 : i32, i32, i32
  }
  func.func @transform_4(%arg0: i32, %arg1: i32) -> (i32, i32, i32) {
    %c0_i32 = arith.constant 0 : i32
    %c0_i32_0 = arith.constant 0 : i32
    %c0_i32_1 = arith.constant 0 : i32
    return %arg0, %c0_i32, %c0_i32_0 : i32, i32, i32
  }
}

module attributes {stable_mosaic.version = 11 : i64} {
  func.func @_apply_kernel(%arg0: i32, %arg1: i32, %arg2: memref<1x16x128xf32, #tpu.memory_space<vmem>>, %arg3: memref<16x1xf32, #tpu.memory_space<vmem>>, %arg4: memref<16x1xf32, #tpu.memory_space<vmem>>, %arg5: memref<1x8x128xf32, #tpu.memory_space<vmem>>) attributes {dimension_semantics = [#tpu.dimension_semantics<parallel>, #tpu.dimension_semantics<parallel>], iteration_bounds = array<i64: 2, 2>, scalar_prefetch = 0 : i64, scratch_operands = 0 : i64, tpu.core_type = #tpu.core_type<tc>, window_params = [{transform_indices = @transform_0, window_bounds = array<i64: 1, 16, 128>}, {pipeline_mode = #tpu.pipeline_mode<synchronous>, transform_indices = @transform_1, window_bounds = array<i64: 16, 1>}, {pipeline_mode = #tpu.pipeline_mode<synchronous>, transform_indices = @transform_2, window_bounds = array<i64: 16, 1>}, {transform_indices = @transform_3, window_bounds = array<i64: 1, 8, 128>}]} {
    %c0 = arith.constant 0 : index
    %c0_0 = arith.constant 0 : index
    %c0_1 = arith.constant 0 : index
    %0 = vector.load %arg2[%c0, %c0_0, %c0_1] : memref<1x16x128xf32, #tpu.memory_space<vmem>>, vector<1x16x128xf32>
    %1 = vector.shape_cast %0 : vector<1x16x128xf32> to vector<16x128xf32>
    %c0_2 = arith.constant 0 : index
    %c0_3 = arith.constant 0 : index
    %2 = vector.load %arg3[%c0_2, %c0_3] : memref<16x1xf32, #tpu.memory_space<vmem>>, vector<16x1xf32>
    %3 = vector.broadcast %2 : vector<16x1xf32> to vector<16x128xf32>
    %4 = arith.mulf %1, %3 : vector<16x128xf32>
    %c0_4 = arith.constant 0 : index
    %c0_5 = arith.constant 0 : index
    %5 = vector.load %arg4[%c0_4, %c0_5] : memref<16x1xf32, #tpu.memory_space<vmem>>, vector<16x1xf32>
    %6 = vector.broadcast %5 : vector<16x1xf32> to vector<16x128xf32>
    %7 = arith.addf %4, %6 : vector<16x128xf32>
    %cst = arith.constant 0.000000e+00 : f32
    %8 = vector.broadcast %cst : f32 to vector<16x128xf32>
    %9 = arith.cmpf ogt, %7, %8 : vector<16x128xf32>
    %cst_6 = arith.constant 1.000000e-01 : f32
    %10 = vector.broadcast %cst_6 : f32 to vector<16x128xf32>
    %11 = arith.mulf %10, %7 : vector<16x128xf32>
    %12 = arith.select %9, %7, %11 : vector<16x128xi1>, vector<16x128xf32>
    %13 = vector.extract_strided_slice %12 {offsets = [0, 0], sizes = [8, 128], strides = [1, 1]} : vector<16x128xf32> to vector<8x128xf32>
    %c0_7 = arith.constant 0 : index
    %c0_8 = arith.constant 0 : index
    %c0_9 = arith.constant 0 : index
    %14 = vector.load %arg5[%c0_7, %c0_8, %c0_9] : memref<1x8x128xf32, #tpu.memory_space<vmem>>, vector<1x8x128xf32>
    %15 = vector.shape_cast %14 : vector<1x8x128xf32> to vector<8x128xf32>
    %16 = vector.shape_cast %13 : vector<8x128xf32> to vector<1x8x128xf32>
    tpu.vector_store %arg5[%c0_7, %c0_8, %c0_9], %16 {strides = array<i32>} : memref<1x8x128xf32, #tpu.memory_space<vmem>>, vector<1x8x128xf32>,
    return
  }
  func.func @transform_0(%arg0: i32, %arg1: i32) -> (i32, i32, i32) {
    %c0_i32 = arith.constant 0 : i32
    %c0_i32_0 = arith.constant 0 : i32
    return %arg0, %c0_i32, %arg1 : i32, i32, i32
  }
  func.func @transform_1(%arg0: i32, %arg1: i32) -> (i32, i32) {
    %c0_i32 = arith.constant 0 : i32
    %c0_i32_0 = arith.constant 0 : i32
    %c0_i32_1 = arith.constant 0 : i32
    return %c0_i32, %c0_i32_0 : i32, i32
  }
  func.func @transform_2(%arg0: i32, %arg1: i32) -> (i32, i32) {
    %c0_i32 = arith.constant 0 : i32
    %c0_i32_0 = arith.constant 0 : i32
    %c0_i32_1 = arith.constant 0 : i32
    return %c0_i32, %c0_i32_0 : i32, i32
  }
  func.func @transform_3(%arg0: i32, %arg1: i32) -> (i32, i32, i32) {
    %c0_i32 = arith.constant 0 : i32
    %c0_i32_0 = arith.constant 0 : i32
    return %arg0, %c0_i32, %arg1 : i32, i32, i32
  }
}

</mosaic_0001>

<llo_original>
// kernel: conv_layer_forward.3
$region0: #{conv_layer_forward.3}
  #allocation0 [shape = 'u32[]', space=smem, size = 0x4, offset = 0x4, fixed_abs, tag = 'smem constant byte address 0x4 - core index']
  #allocation1 [shape = 'u32[144,128]{1,0:T(1,128)}', space=vmem, size = 0x12000, scoped, tag = 'internal scratch']
  %s0 = inlined_call_operand.vmem [shape: f32[2,16,256], index: 0, kind: input, shape index: {}]
  %s1 = inlined_call_operand.vmem [shape: f32[16,1], index: 1, kind: input, shape index: {}]
  %s2 = inlined_call_operand.vmem [shape: f32[16,1], index: 2, kind: input, shape index: {}]
  %s3 = inlined_call_operand.vmem [shape: f32[2,8,256], index: 3, kind: output, shape index: {}]
  %s4 = sld [smem:[#allocation0]]
  $region83: #{conv_layer_forward.3} parent=0
    _
  %s6 = ssub.s32 1, %s4
  %s7 = scalar_select 0, %s6, %s4
  $region1: #{conv_layer_forward.3} parent=0
    #allocation2 [shape = 'u8[16384]{0}', space=vmem, size = 0x4000, scoped, tag = 'input window, operand 0']
    loop: start=0, step=1, limit=6
    $region2: #{conv_layer_forward.3} parent=1 // loop_pre_header
      _
    $region3: #{conv_layer_forward.3} parent=1 // loop_header
      %s9 = sphi 0, %s13
      %p10 = scmp.ge.s32.totalorder %s9, 6
      %s16 = sphi 0, %s28
      %s17 = sphi 0, %s24
      %s18 = sphi 0, %s16
      %s19 = sphi 0, %s17
      %s20 = sphi 0, %s18
      %s21 = sphi 0, %s19
      %s33 = sphi 0, %s35
      %s36 = sphi 0, %s33
      %s37 = sphi 0, %s36
      %s53 = sphi 0, %s37
      %s57 = sphi 0, %s57
      %s59 = sphi 0, %s57
      %s60 = sphi 0, %s59
      %s74 = sphi 0, %s60
      %s78 = sphi 0, %s78
      %s80 = sphi 0, %s78
      %s81 = sphi 0, %s80
      %s95 = sphi 0, %s81
      %s103 = sphi 0, %s105
      %s106 = sphi 0, %s103
      %s107 = sphi 0, %s106
      %s123 = sphi 0, %s107
    $region4: #{conv_layer_forward.3} parent=1 // loop_header_branch
      %12 = sbr.rel (%p10) target = $region8
    $region5: #{conv_layer_forward.3} parent=1 // loop_body
      %s14 = ssub.s32 %s9, 1
      %s15 = ssub.s32 %s9, 2
      %s22 = sadd.s32 1, %s17
      %p23 = scmp.ge.s32.totalorder %s22, 2
      %s24 = scalar_select %p23, 0, %s22
      %s25 = sadd.s32 1, %s16
      %s26 = scalar_select %p23, %s25, %s16
      %p27 = scmp.ge.s32.totalorder %s26, 2
      %s28 = scalar_select %p27, 0, %s26
      %s29 = ssub.s32 %s16, %s28
      %s30 = ssub.s32 %s17, %s24
      %s31 = sor.u32 %s29, %s30
      %p32 = scmp.eq.s32.totalorder %s31, 0
      %s34 = sadd.s32 %s33, 1
      %s35 = scalar_select %p32, %s33, %s34
      %p38 = pneg %p32
      %p39 = scmp.eq.s32.totalorder %s9, 3
      %p40 = por %p38, %p39
      %p41 = scmp.ne.s32.totalorder %s33, %s36
      %p42 = scmp.eq.s32.totalorder %s9, 0
      %p43 = por %p41, %p42
      %p44 = scmp.ne.s32.totalorder %s33, %s36
      %p45 = scmp.eq.s32.totalorder %s14, 3
      %p46 = por %p44, %p45
      %p47 = scmp.ne.s32.totalorder %s36, %s37
      %p48 = scmp.eq.s32.totalorder %s14, 0
      %p49 = por %p47, %p48
      %p50 = scmp.ne.s32.totalorder %s36, %s37
      %p51 = scmp.eq.s32.totalorder %s15, 3
      %p52 = por %p50, %p51
      %p54 = scmp.ne.s32.totalorder %s37, %s53
      %p55 = scmp.eq.s32.totalorder %s15, 0
      %p56 = por %p54, %p55
      %s58 = sadd.s32 %s57, 1
      %p61 = scmp.eq.s32.totalorder %s9, 3
      %p62 = scmp.ne.s32.totalorder %s57, %s59
      %p63 = scmp.eq.s32.totalorder %s9, 0
      %p64 = por %p62, %p63
      %p65 = scmp.ne.s32.totalorder %s57, %s59
      %p66 = scmp.eq.s32.totalorder %s14, 3
      %p67 = por %p65, %p66
      %p68 = scmp.ne.s32.totalorder %s59, %s60
      %p69 = scmp.eq.s32.totalorder %s14, 0
      %p70 = por %p68, %p69
      %p71 = scmp.ne.s32.totalorder %s59, %s60
      %p72 = scmp.eq.s32.totalorder %s15, 3
      %p73 = por %p71, %p72
      %p75 = scmp.ne.s32.totalorder %s60, %s74
      %p76 = scmp.eq.s32.totalorder %s15, 0
      %p77 = por %p75, %p76
      %s79 = sadd.s32 %s78, 1
      %p82 = scmp.eq.s32.totalorder %s9, 3
      %p83 = scmp.ne.s32.totalorder %s78, %s80
      %p84 = scmp.eq.s32.totalorder %s9, 0
      %p85 = por %p83, %p84
      %p86 = scmp.ne.s32.totalorder %s78, %s80
      %p87 = scmp.eq.s32.totalorder %s14, 3
      %p88 = por %p86, %p87
      %p89 = scmp.ne.s32.totalorder %s80, %s81
      %p90 = scmp.eq.s32.totalorder %s14, 0
      %p91 = por %p89, %p90
      %p92 = scmp.ne.s32.totalorder %s80, %s81
      %p93 = scmp.eq.s32.totalorder %s15, 3
      %p94 = por %p92, %p93
      %p96 = scmp.ne.s32.totalorder %s81, %s95
      %p97 = scmp.eq.s32.totalorder %s15, 0
      %p98 = por %p96, %p97
      %s99 = ssub.s32 %s16, %s28
      %s100 = ssub.s32 %s17, %s24
      %s101 = sor.u32 %s99, %s100
      %p102 = scmp.eq.s32.totalorder %s101, 0
      %s104 = sadd.s32 %s103, 1
      %s105 = scalar_select %p102, %s103, %s104
      %p108 = pneg %p102
      %p109 = scmp.eq.s32.totalorder %s9, 3
      %p110 = por %p108, %p109
      %p111 = scmp.ne.s32.totalorder %s103, %s106
      %p112 = scmp.eq.s32.totalorder %s9, 0
      %p113 = por %p111, %p112
      %p114 = scmp.ne.s32.totalorder %s103, %s106
      %p115 = scmp.eq.s32.totalorder %s14, 3
      %p116 = por %p114, %p115
      %p117 = scmp.ne.s32.totalorder %s106, %s107
      %p118 = scmp.eq.s32.totalorder %s14, 0
      %p119 = por %p117, %p118
      %p120 = scmp.ne.s32.totalorder %s106, %s107
      %p121 = scmp.eq.s32.totalorder %s15, 3
      %p122 = por %p120, %p121
      %p124 = scmp.ne.s32.totalorder %s107, %s123
      %p125 = scmp.eq.s32.totalorder %s15, 0
      %p126 = por %p124, %p125
      %p127 = scmp.le.s32.totalorder 1, %s9
      %p128 = scmp.lt.s32.totalorder %s9, 5
      %p129 = pnand %p127, %p128
      %p130 = pneg %p129
      // Predicated region
      $region9: #{conv_layer_forward.3} parent=5 // pred_check
        _
      $region10: #{conv_layer_forward.3} parent=5 // pred_check_branch
        %132 = sbr.rel (%p129) target = $region12
      $region11: #{conv_layer_forward.3} parent=5 // pred_region
        %s133 = ssub.s32 %s9, 1
        // Predicated region
        $region13: #{conv_layer_forward.3} parent=11 // pred_check
          %p134 = pneg %p70
        $region14: #{conv_layer_forward.3} parent=11 // pred_check_branch
          %136 = sbr.rel (%p134) target = $region16
        $region15: #{conv_layer_forward.3} parent=11 // pred_region
          _
        $region16: #{conv_layer_forward.3} parent=11 // pred_fallthru
          _
        // Predicated region
        $region17: #{conv_layer_forward.3} parent=11 // pred_check
          %p137 = pneg %p91
        $region18: #{conv_layer_forward.3} parent=11 // pred_check_branch
          %139 = sbr.rel (%p137) target = $region20
        $region19: #{conv_layer_forward.3} parent=11 // pred_region
          _
        $region20: #{conv_layer_forward.3} parent=11 // pred_fallthru
          _
      $region12: #{conv_layer_forward.3} parent=5 // pred_fallthru
        _
      %p140 = scmp.lt.s32.totalorder %s9, 4
      // Predicated region
      $region21: #{conv_layer_forward.3} parent=5 // pred_check
        %p141 = pneg %p140
      $region22: #{conv_layer_forward.3} parent=5 // pred_check_branch
        %143 = sbr.rel (%p141) target = $region24
      $region23: #{conv_layer_forward.3} parent=5 // pred_region
        // Predicated region
        $region25: #{conv_layer_forward.3} parent=23 // pred_check
          %p144 = pneg %p43
        $region26: #{conv_layer_forward.3} parent=23 // pred_check_branch
          %146 = sbr.rel (%p144) target = $region28
        $region27: #{conv_layer_forward.3} parent=23 // pred_region
          %s147 = sand.u32 %s33, 1
          %s148 = sand.u32 %s33, 1
          %s149 = smul.addr %s148, 16
          %s150 = scalar_lea.vmem [#allocation2], %s149
          %s151 = smul.addr %s16, 4
          %s152 = sadd.s32 %s17, %s151
          %s153 = smul.addr %s152, 8
          %s154 = scalar_lea.vmem %s0, %s153
          // Predicated region
          $region29: #{conv_layer_forward.3} parent=27 // pred_check
            _
          $region30: #{conv_layer_forward.3} parent=27 // pred_check_branch
            %156 = sbr.rel (0) target = $region32
          $region31: #{conv_layer_forward.3} parent=27 // pred_region
            // Predicated region
            $region33: #{conv_layer_forward.3} parent=31 // pred_check
              _
            $region34: #{conv_layer_forward.3} parent=31 // pred_check_branch
              %158 = sbr.rel (0) target = $region36
            $region35: #{conv_layer_forward.3} parent=31 // pred_region
              // Predicated region
              $region48: #{conv_layer_forward.3} parent=35 // pred_check
                _
              $region49: #{conv_layer_forward.3} parent=35 // pred_check_branch
                %176 = sbr.rel (0) target = $region51
              $region50: #{conv_layer_forward.3} parent=35 // pred_region
                loop: start=0, step=1, limit=1
                $region52: #{conv_layer_forward.3} parent=50 // loop_pre_header
                  _
                $region53: #{conv_layer_forward.3} parent=50 // loop_header
                  %s178 = sphi 0, %s182
                  %p179 = scmp.ge.s32.totalorder %s178, 1
                  %s183 = sphi %s154, %s154
                  %s184 = sphi %s150, %s150
                $region54: #{conv_layer_forward.3} parent=50 // loop_header_branch
                  %181 = sbr.rel (%p179) target = $region58
                $region55: #{conv_layer_forward.3} parent=50 // loop_body
                  %v185 = vld [vmem:[%s183] sm:$0xff]
                  %186 = vst [vmem:[%s184] sm:$0xff] %v185
                  %v187 = vld [vmem:[%s183 + $0x10] sm:$0xff]
                  %188 = vst [vmem:[%s184 + $0x8] sm:$0xff] %v187
                $region56: #{conv_layer_forward.3} parent=50 // loop_footer
                  %s182 = sadd.s32 1, %s178
                $region57: #{conv_layer_forward.3} parent=50 // loop_footer_branch
                  %177 = sbr.rel target = $region53
                $region58: #{conv_layer_forward.3} parent=50 // loop_exit
                  _
              $region51: #{conv_layer_forward.3} parent=35 // pred_fallthru
                _
              // Predicated region
              $region59: #{conv_layer_forward.3} parent=35 // pred_check
                _
              $region60: #{conv_layer_forward.3} parent=35 // pred_check_branch
                %190 = sbr.rel target = $region62
              $region61: #{conv_layer_forward.3} parent=35 // pred_region
                _
              $region62: #{conv_layer_forward.3} parent=35 // pred_fallthru
                _
            $region36: #{conv_layer_forward.3} parent=31 // pred_fallthru
              _
            // Predicated region
            $region37: #{conv_layer_forward.3} parent=31 // pred_check
              _
            $region38: #{conv_layer_forward.3} parent=31 // pred_check_branch
              %160 = sbr.rel target = $region40
            $region39: #{conv_layer_forward.3} parent=31 // pred_region
              %s162 = ssub.s32 256, 1
              loop: start=0, step=1, limit=1
              $region41: #{conv_layer_forward.3} parent=39 // loop_pre_header
                _
              $region42: #{conv_layer_forward.3} parent=39 // loop_header
                %s164 = sphi 0, %s168
                %p165 = scmp.ge.s32.totalorder %s164, 1
                %s169 = sphi %s154, %s154
                %s170 = sphi %s150, %s150
              $region43: #{conv_layer_forward.3} parent=39 // loop_header_branch
                %167 = sbr.rel (%p165) target = $region47
              $region44: #{conv_layer_forward.3} parent=39 // loop_body
                %v171 = vld [vmem:[%s169] sm:%s162]
                %172 = vst [vmem:[%s170] sm:%s162] %v171
                %v173 = vld [vmem:[%s169 + $0x10] sm:%s162]
                %174 = vst [vmem:[%s170 + $0x8] sm:%s162] %v173
              $region45: #{conv_layer_forward.3} parent=39 // loop_footer
                %s168 = sadd.s32 1, %s164
              $region46: #{conv_layer_forward.3} parent=39 // loop_footer_branch
                %163 = sbr.rel target = $region42
              $region47: #{conv_layer_forward.3} parent=39 // loop_exit
                _
            $region40: #{conv_layer_forward.3} parent=31 // pred_fallthru
              _
          $region32: #{conv_layer_forward.3} parent=27 // pred_fallthru
            _
          %191 = vnop
        $region28: #{conv_layer_forward.3} parent=23 // pred_fallthru
          _
      $region24: #{conv_layer_forward.3} parent=5 // pred_fallthru
        _
      %p192 = scmp.le.s32.totalorder 1, %s9
      %p193 = scmp.lt.s32.totalorder %s9, 5
      %p194 = pnand %p192, %p193
      %p195 = pneg %p194
      // Predicated region
      $region63: #{conv_layer_forward.3} parent=5 // pred_check
        _
      $region64: #{conv_layer_forward.3} parent=5 // pred_check_branch
        %197 = sbr.rel (%p194) target = $region66
      $region65: #{conv_layer_forward.3} parent=5 // pred_region
        %s198 = ssub.s32 %s9, 1
        %s199 = sand.u32 %s36, 1
        %s200 = sand.u32 %s36, 1
        %s201 = smul.addr %s200, 16
        %s202 = scalar_lea.vmem [#allocation2], %s201
        // Predicated region
        $region67: #{conv_layer_forward.3} parent=65 // pred_check
          %p203 = pneg %p49
        $region68: #{conv_layer_forward.3} parent=65 // pred_check_branch
          %205 = sbr.rel (%p203) target = $region70
        $region69: #{conv_layer_forward.3} parent=65 // pred_region
          _
        $region70: #{conv_layer_forward.3} parent=65 // pred_fallthru
          _
        %s206 = sand.u32 %s36, 1
        %s207 = sand.u32 %s36, 1
        %s208 = smul.addr %s207, 16
        %s209 = scalar_lea.vmem [#allocation2], %s208
        %p210 = pneg %p49
        %p211 = pneg %p46
        %p212 = pneg %p70
        %p213 = pneg %p67
        %p214 = pneg %p91
        %p215 = pneg %p88
        %p216 = pneg %p119
        %p217 = pneg %p116
        %p218 = scmp.lt.s32.totalorder %s18, 1
        %s219 = scalar_select %p218, %s18, 1
        %p220 = scmp.lt.s32.totalorder %s19, 1
        %s221 = scalar_select %p220, %s19, 1
        %s222 = smul.addr %s219, 2
        %s223 = sadd.s32 %s221, %s222
        %s224 = smul.addr %s223, 8
        %s225 = scalar_lea.vmem %s3, %s224
        %p226 = scmp.lt.s32.totalorder %s18, 1
        %s227 = scalar_select %p226, %s18, 1
        %p228 = scmp.lt.s32.totalorder %s19, 1
        %s229 = scalar_select %p228, %s19, 1
        %s230 = smul.addr %s227, 2
        %s231 = sadd.s32 %s229, %s230
        %s232 = smul.addr %s231, 8
        %s233 = scalar_lea.vmem %s3, %s232
        %v234 = vld [vmem:[%s202] sm:$0xff]
        %v235 = vld [vmem:[%s1] sm:$0xff]
        %237 = vset.pattern.permute.xlu0 0
        %238 = vperm.xlu0 %237, %v235
        %v239 = vpop.permute.xlu0 %238
        %v241 = vmul.f32 %v234, %v239
        %v242 = vld [vmem:[%s2] sm:$0xff]
        %244 = vset.pattern.permute.xlu0 0
        %245 = vperm.xlu0 %244, %v242
        %v246 = vpop.permute.xlu0 %245
        %v248 = vadd.f32 %v241, %v246
        %vm249 = vcmp.gt.f32.partialorder %v248, 0.0
        %v250 = vmul.f32 %v248, 0.1
        %v251 = vsel %vm249, %v248, %v250
        %252 = vst [vmem:[%s233] sm:$0xff] %v251
        %p253 = scmp.lt.s32.totalorder %s18, 1
        %s254 = scalar_select %p253, %s18, 1
        %p255 = scmp.lt.s32.totalorder %s19, 1
        %s256 = scalar_select %p255, %s19, 1
        %s257 = smul.addr %s254, 2
        %s258 = sadd.s32 %s256, %s257
        %s259 = smul.addr %s258, 8
        %s260 = scalar_lea.vmem %s3, %s259
        // Predicated region
        $region71: #{conv_layer_forward.3} parent=65 // pred_check
          %p261 = pneg %p116
        $region72: #{conv_layer_forward.3} parent=65 // pred_check_branch
          %263 = sbr.rel (%p261) target = $region74
        $region73: #{conv_layer_forward.3} parent=65 // pred_region
          _
        $region74: #{conv_layer_forward.3} parent=65 // pred_fallthru
          _
      $region66: #{conv_layer_forward.3} parent=5 // pred_fallthru
        _
      %p264 = scmp.le.s32.totalorder 2, %s9
      // Predicated region
      $region75: #{conv_layer_forward.3} parent=5 // pred_check
        %p265 = pneg %p264
      $region76: #{conv_layer_forward.3} parent=5 // pred_check_branch
        %267 = sbr.rel (%p265) target = $region78
      $region77: #{conv_layer_forward.3} parent=5 // pred_region
        %s268 = ssub.s32 %s9, 2
        // Predicated region
        $region79: #{conv_layer_forward.3} parent=77 // pred_check
          %p269 = pneg %p122
        $region80: #{conv_layer_forward.3} parent=77 // pred_check_branch
          %271 = sbr.rel (%p269) target = $region82
        $region81: #{conv_layer_forward.3} parent=77 // pred_region
          %p272 = scmp.lt.s32.totalorder %s20, 1
          %s273 = scalar_select %p272, %s20, 1
          %p274 = scmp.lt.s32.totalorder %s21, 1
          %s275 = scalar_select %p274, %s21, 1
          %s276 = smul.addr %s273, 2
          %s277 = sadd.s32 %s275, %s276
          %s278 = smul.addr %s277, 8
          %s279 = scalar_lea.vmem %s3, %s278
        $region82: #{conv_layer_forward.3} parent=77 // pred_fallthru
          _
      $region78: #{conv_layer_forward.3} parent=5 // pred_fallthru
        _
    $region6: #{conv_layer_forward.3} parent=1 // loop_footer
      %s13 = sadd.s32 1, %s9
    $region7: #{conv_layer_forward.3} parent=1 // loop_footer_branch
      %8 = sbr.rel target = $region3
    $region8: #{conv_layer_forward.3} parent=1 // loop_exit
      _

// kernel: conv_layer_forward.2
$region0: #{conv_layer_forward.2}
  #allocation0 [shape = 'u32[]', space=smem, size = 0x4, offset = 0x4, fixed_abs, tag = 'smem constant byte address 0x4 - core index']
  #allocation1 [shape = 'u32[144,128]{1,0:T(1,128)}', space=vmem, size = 0x12000, scoped, tag = 'internal scratch']
  %s0 = inlined_call_operand.vmem [shape: bf16[2,48,256], index: 0, kind: input, shape index: {}]
  %s1 = inlined_call_operand.vmem [shape: bf16[16,48], index: 1, kind: input, shape index: {}]
  %s2 = inlined_call_operand.vmem [shape: f32[2,16,256], index: 2, kind: output, shape index: {0}]
  %s3 = inlined_call_operand.vmem [shape: f32[2,16,1], index: 3, kind: output, shape index: {1}]
  %s4 = inlined_call_operand.vmem [shape: f32[2,16,1], index: 4, kind: output, shape index: {2}]
  %5 = xla_tuple %s2, %s3, %s4
  %s6 = sld [smem:[#allocation0]]
  $region136: #{conv_layer_forward.2} parent=0
    _
  %s8 = ssub.s32 1, %s6
  %s9 = scalar_select 0, %s8, %s6
  $region1: #{conv_layer_forward.2} parent=0
    #allocation2 [shape = 'u8[24576]{0}', space=vmem, size = 0x6000, scoped, tag = 'input window, operand 0']
    #allocation3 [shape = 'u8[16384]{0}', space=vmem, size = 0x4000, scoped, tag = 'output window, operand 0']
    loop: start=0, step=1, limit=6
    $region2: #{conv_layer_forward.2} parent=1 // loop_pre_header
      _
    $region3: #{conv_layer_forward.2} parent=1 // loop_header
      %s11 = sphi 0, %s15
      %p12 = scmp.ge.s32.totalorder %s11, 6
      %s18 = sphi 0, %s30
      %s19 = sphi 0, %s26
      %s20 = sphi 0, %s18
      %s21 = sphi 0, %s19
      %s22 = sphi 0, %s20
      %s23 = sphi 0, %s21
      %s35 = sphi 0, %s37
      %s38 = sphi 0, %s35
      %s39 = sphi 0, %s38
      %s55 = sphi 0, %s39
      %s59 = sphi 0, %s59
      %s61 = sphi 0, %s59
      %s62 = sphi 0, %s61
      %s76 = sphi 0, %s62
      %s84 = sphi 0, %s86
      %s87 = sphi 0, %s84
      %s88 = sphi 0, %s87
      %s104 = sphi 0, %s88
      %s110 = sphi 0, %s112
      %s113 = sphi 0, %s110
      %s114 = sphi 0, %s113
      %s130 = sphi 0, %s114
      %s136 = sphi 0, %s138
      %s139 = sphi 0, %s136
      %s140 = sphi 0, %s139
      %s156 = sphi 0, %s140
    $region4: #{conv_layer_forward.2} parent=1 // loop_header_branch
      %14 = sbr.rel (%p12) target = $region8
    $region5: #{conv_layer_forward.2} parent=1 // loop_body
      %s16 = ssub.s32 %s11, 1
      %s17 = ssub.s32 %s11, 2
      %s24 = sadd.s32 1, %s19
      %p25 = scmp.ge.s32.totalorder %s24, 2
      %s26 = scalar_select %p25, 0, %s24
      %s27 = sadd.s32 1, %s18
      %s28 = scalar_select %p25, %s27, %s18
      %p29 = scmp.ge.s32.totalorder %s28, 2
      %s30 = scalar_select %p29, 0, %s28
      %s31 = ssub.s32 %s18, %s30
      %s32 = ssub.s32 %s19, %s26
      %s33 = sor.u32 %s31, %s32
      %p34 = scmp.eq.s32.totalorder %s33, 0
      %s36 = sadd.s32 %s35, 1
      %s37 = scalar_select %p34, %s35, %s36
      %p40 = pneg %p34
      %p41 = scmp.eq.s32.totalorder %s11, 3
      %p42 = por %p40, %p41
      %p43 = scmp.ne.s32.totalorder %s35, %s38
      %p44 = scmp.eq.s32.totalorder %s11, 0
      %p45 = por %p43, %p44
      %p46 = scmp.ne.s32.totalorder %s35, %s38
      %p47 = scmp.eq.s32.totalorder %s16, 3
      %p48 = por %p46, %p47
      %p49 = scmp.ne.s32.totalorder %s38, %s39
      %p50 = scmp.eq.s32.totalorder %s16, 0
      %p51 = por %p49, %p50
      %p52 = scmp.ne.s32.totalorder %s38, %s39
      %p53 = scmp.eq.s32.totalorder %s17, 3
      %p54 = por %p52, %p53
      %p56 = scmp.ne.s32.totalorder %s39, %s55
      %p57 = scmp.eq.s32.totalorder %s17, 0
      %p58 = por %p56, %p57
      %s60 = sadd.s32 %s59, 1
      %p63 = scmp.eq.s32.totalorder %s11, 3
      %p64 = scmp.ne.s32.totalorder %s59, %s61
      %p65 = scmp.eq.s32.totalorder %s11, 0
      %p66 = por %p64, %p65
      %p67 = scmp.ne.s32.totalorder %s59, %s61
      %p68 = scmp.eq.s32.totalorder %s16, 3
      %p69 = por %p67, %p68
      %p70 = scmp.ne.s32.totalorder %s61, %s62
      %p71 = scmp.eq.s32.totalorder %s16, 0
      %p72 = por %p70, %p71
      %p73 = scmp.ne.s32.totalorder %s61, %s62
      %p74 = scmp.eq.s32.totalorder %s17, 3
      %p75 = por %p73, %p74
      %p77 = scmp.ne.s32.totalorder %s62, %s76
      %p78 = scmp.eq.s32.totalorder %s17, 0
      %p79 = por %p77, %p78
      %s80 = ssub.s32 %s18, %s30
      %s81 = ssub.s32 %s19, %s26
      %s82 = sor.u32 %s80, %s81
      %p83 = scmp.eq.s32.totalorder %s82, 0
      %s85 = sadd.s32 %s84, 1
      %s86 = scalar_select %p83, %s84, %s85
      %p89 = pneg %p83
      %p90 = scmp.eq.s32.totalorder %s11, 3
      %p91 = por %p89, %p90
      %p92 = scmp.ne.s32.totalorder %s84, %s87
      %p93 = scmp.eq.s32.totalorder %s11, 0
      %p94 = por %p92, %p93
      %p95 = scmp.ne.s32.totalorder %s84, %s87
      %p96 = scmp.eq.s32.totalorder %s16, 3
      %p97 = por %p95, %p96
      %p98 = scmp.ne.s32.totalorder %s87, %s88
      %p99 = scmp.eq.s32.totalorder %s16, 0
      %p100 = por %p98, %p99
      %p101 = scmp.ne.s32.totalorder %s87, %s88
      %p102 = scmp.eq.s32.totalorder %s17, 3
      %p103 = por %p101, %p102
      %p105 = scmp.ne.s32.totalorder %s88, %s104
      %p106 = scmp.eq.s32.totalorder %s17, 0
      %p107 = por %p105, %p106
      %s108 = ssub.s32 %s18, %s30
      %p109 = scmp.eq.s32.totalorder %s108, 0
      %s111 = sadd.s32 %s110, 1
      %s112 = scalar_select %p109, %s110, %s111
      %p115 = pneg %p109
      %p116 = scmp.eq.s32.totalorder %s11, 3
      %p117 = por %p115, %p116
      %p118 = scmp.ne.s32.totalorder %s110, %s113
      %p119 = scmp.eq.s32.totalorder %s11, 0
      %p120 = por %p118, %p119
      %p121 = scmp.ne.s32.totalorder %s110, %s113
      %p122 = scmp.eq.s32.totalorder %s16, 3
      %p123 = por %p121, %p122
      %p124 = scmp.ne.s32.totalorder %s113, %s114
      %p125 = scmp.eq.s32.totalorder %s16, 0
      %p126 = por %p124, %p125
      %p127 = scmp.ne.s32.totalorder %s113, %s114
      %p128 = scmp.eq.s32.totalorder %s17, 3
      %p129 = por %p127, %p128
      %p131 = scmp.ne.s32.totalorder %s114, %s130
      %p132 = scmp.eq.s32.totalorder %s17, 0
      %p133 = por %p131, %p132
      %s134 = ssub.s32 %s18, %s30
      %p135 = scmp.eq.s32.totalorder %s134, 0
      %s137 = sadd.s32 %s136, 1
      %s138 = scalar_select %p135, %s136, %s137
      %p141 = pneg %p135
      %p142 = scmp.eq.s32.totalorder %s11, 3
      %p143 = por %p141, %p142
      %p144 = scmp.ne.s32.totalorder %s136, %s139
      %p145 = scmp.eq.s32.totalorder %s11, 0
      %p146 = por %p144, %p145
      %p147 = scmp.ne.s32.totalorder %s136, %s139
      %p148 = scmp.eq.s32.totalorder %s16, 3
      %p149 = por %p147, %p148
      %p150 = scmp.ne.s32.totalorder %s139, %s140
      %p151 = scmp.eq.s32.totalorder %s16, 0
      %p152 = por %p150, %p151
      %p153 = scmp.ne.s32.totalorder %s139, %s140
      %p154 = scmp.eq.s32.totalorder %s17, 3
      %p155 = por %p153, %p154
      %p157 = scmp.ne.s32.totalorder %s140, %s156
      %p158 = scmp.eq.s32.totalorder %s17, 0
      %p159 = por %p157, %p158
      %p160 = scmp.le.s32.totalorder 1, %s11
      %p161 = scmp.lt.s32.totalorder %s11, 5
      %p162 = pnand %p160, %p161
      %p163 = pneg %p162
      // Predicated region
      $region9: #{conv_layer_forward.2} parent=5 // pred_check
        _
      $region10: #{conv_layer_forward.2} parent=5 // pred_check_branch
        %165 = sbr.rel (%p162) target = $region12
      $region11: #{conv_layer_forward.2} parent=5 // pred_region
        %s166 = ssub.s32 %s11, 1
        // Predicated region
        $region13: #{conv_layer_forward.2} parent=11 // pred_check
          %p167 = pneg %p72
        $region14: #{conv_layer_forward.2} parent=11 // pred_check_branch
          %169 = sbr.rel (%p167) target = $region16
        $region15: #{conv_layer_forward.2} parent=11 // pred_region
          _
        $region16: #{conv_layer_forward.2} parent=11 // pred_fallthru
          _
      $region12: #{conv_layer_forward.2} parent=5 // pred_fallthru
        _
      %p170 = scmp.lt.s32.totalorder %s11, 4
      // Predicated region
      $region17: #{conv_layer_forward.2} parent=5 // pred_check
        %p171 = pneg %p170
      $region18: #{conv_layer_forward.2} parent=5 // pred_check_branch
        %173 = sbr.rel (%p171) target = $region20
      $region19: #{conv_layer_forward.2} parent=5 // pred_region
        // Predicated region
        $region21: #{conv_layer_forward.2} parent=19 // pred_check
          %p174 = pneg %p45
        $region22: #{conv_layer_forward.2} parent=19 // pred_check_branch
          %176 = sbr.rel (%p174) target = $region24
        $region23: #{conv_layer_forward.2} parent=19 // pred_region
          %s177 = sand.u32 %s35, 1
          %s178 = sand.u32 %s35, 1
          %s179 = smul.addr %s178, 24
          %s180 = scalar_lea.vmem [#allocation2], %s179
          %s181 = smul.addr %s18, 12
          %s182 = sadd.s32 %s19, %s181
          %s183 = smul.addr %s182, 4
          %s184 = scalar_lea.vmem %s0, %s183
          // Predicated region
          $region25: #{conv_layer_forward.2} parent=23 // pred_check
            _
          $region26: #{conv_layer_forward.2} parent=23 // pred_check_branch
            %186 = sbr.rel (0) target = $region28
          $region27: #{conv_layer_forward.2} parent=23 // pred_region
            // Predicated region
            $region29: #{conv_layer_forward.2} parent=27 // pred_check
              _
            $region30: #{conv_layer_forward.2} parent=27 // pred_check_branch
              %188 = sbr.rel target = $region32
            $region31: #{conv_layer_forward.2} parent=27 // pred_region
              // Predicated region
              $region44: #{conv_layer_forward.2} parent=31 // pred_check
                _
              $region45: #{conv_layer_forward.2} parent=31 // pred_check_branch
                %214 = sbr.rel (0) target = $region47
              $region46: #{conv_layer_forward.2} parent=31 // pred_region
                loop: start=0, step=1, limit=1
                $region48: #{conv_layer_forward.2} parent=46 // loop_pre_header
                  _
                $region49: #{conv_layer_forward.2} parent=46 // loop_header
                  %s216 = sphi 0, %s220
                  %p217 = scmp.ge.s32.totalorder %s216, 1
                  %s221 = sphi %s184, %s184
                  %s222 = sphi %s180, %s180
                $region50: #{conv_layer_forward.2} parent=46 // loop_header_branch
                  %219 = sbr.rel (%p217) target = $region54
                $region51: #{conv_layer_forward.2} parent=46 // loop_body
                  _
                $region52: #{conv_layer_forward.2} parent=46 // loop_footer
                  %s220 = sadd.s32 1, %s216
                $region53: #{conv_layer_forward.2} parent=46 // loop_footer_branch
                  %215 = sbr.rel target = $region49
                $region54: #{conv_layer_forward.2} parent=46 // loop_exit
                  _
                %s224 = ssub.s32 16, 1
                loop: start=0, step=1, limit=1
                $region55: #{conv_layer_forward.2} parent=46 // loop_pre_header
                  _
                $region56: #{conv_layer_forward.2} parent=46 // loop_header
                  %s226 = sphi 0, %s230
                  %p227 = scmp.ge.s32.totalorder %s226, 1
                  %s231 = sphi %s184, %s184
                  %s232 = sphi %s180, %s180
                $region57: #{conv_layer_forward.2} parent=46 // loop_header_branch
                  %229 = sbr.rel (%p227) target = $region61
                $region58: #{conv_layer_forward.2} parent=46 // loop_body
                  %v233 = vld [vmem:[%s231] sm:%s224]
                  %234 = vst [vmem:[%s232] sm:%s224] %v233
                  %v235 = vld [vmem:[%s231 + $0x8] sm:%s224]
                  %236 = vst [vmem:[%s232 + $0x4] sm:%s224] %v235
                  %v237 = vld [vmem:[%s231 + $0x10] sm:%s224]
                  %238 = vst [vmem:[%s232 + $0x8] sm:%s224] %v237
                  %v239 = vld [vmem:[%s231 + $0x18] sm:%s224]
                  %240 = vst [vmem:[%s232 + $0xc] sm:%s224] %v239
                  %v241 = vld [vmem:[%s231 + $0x20] sm:%s224]
                  %242 = vst [vmem:[%s232 + $0x10] sm:%s224] %v241
                  %v243 = vld [vmem:[%s231 + $0x28] sm:%s224]
                  %244 = vst [vmem:[%s232 + $0x14] sm:%s224] %v243
                $region59: #{conv_layer_forward.2} parent=46 // loop_footer
                  %s230 = sadd.s32 1, %s226
                $region60: #{conv_layer_forward.2} parent=46 // loop_footer_branch
                  %225 = sbr.rel target = $region56
                $region61: #{conv_layer_forward.2} parent=46 // loop_exit
                  _
              $region47: #{conv_layer_forward.2} parent=31 // pred_fallthru
                _
            $region32: #{conv_layer_forward.2} parent=27 // pred_fallthru
              _
            // Predicated region
            $region33: #{conv_layer_forward.2} parent=27 // pred_check
              _
            $region34: #{conv_layer_forward.2} parent=27 // pred_check_branch
              %190 = sbr.rel (0) target = $region36
            $region35: #{conv_layer_forward.2} parent=27 // pred_region
              %s192 = ssub.s32 16, 1
              loop: start=0, step=1, limit=1
              $region37: #{conv_layer_forward.2} parent=35 // loop_pre_header
                _
              $region38: #{conv_layer_forward.2} parent=35 // loop_header
                %s194 = sphi 0, %s198
                %p195 = scmp.ge.s32.totalorder %s194, 1
                %s199 = sphi %s184, %s184
                %s200 = sphi %s180, %s180
              $region39: #{conv_layer_forward.2} parent=35 // loop_header_branch
                %197 = sbr.rel (%p195) target = $region43
              $region40: #{conv_layer_forward.2} parent=35 // loop_body
                %v201 = vld [vmem:[%s199] sm:%s192]
                %202 = vst [vmem:[%s200] sm:%s192] %v201
                %v203 = vld [vmem:[%s199 + $0x8] sm:%s192]
                %204 = vst [vmem:[%s200 + $0x4] sm:%s192] %v203
                %v205 = vld [vmem:[%s199 + $0x10] sm:%s192]
                %206 = vst [vmem:[%s200 + $0x8] sm:%s192] %v205
                %v207 = vld [vmem:[%s199 + $0x18] sm:%s192]
                %208 = vst [vmem:[%s200 + $0xc] sm:%s192] %v207
                %v209 = vld [vmem:[%s199 + $0x20] sm:%s192]
                %210 = vst [vmem:[%s200 + $0x10] sm:%s192] %v209
                %v211 = vld [vmem:[%s199 + $0x28] sm:%s192]
                %212 = vst [vmem:[%s200 + $0x14] sm:%s192] %v211
              $region41: #{conv_layer_forward.2} parent=35 // loop_footer
                %s198 = sadd.s32 1, %s194
              $region42: #{conv_layer_forward.2} parent=35 // loop_footer_branch
                %193 = sbr.rel target = $region38
              $region43: #{conv_layer_forward.2} parent=35 // loop_exit
                _
            $region36: #{conv_layer_forward.2} parent=27 // pred_fallthru
              _
          $region28: #{conv_layer_forward.2} parent=23 // pred_fallthru
            _
          %245 = vnop
        $region24: #{conv_layer_forward.2} parent=19 // pred_fallthru
          _
      $region20: #{conv_layer_forward.2} parent=5 // pred_fallthru
        _
      %p246 = scmp.le.s32.totalorder 1, %s11
      %p247 = scmp.lt.s32.totalorder %s11, 5
      %p248 = pnand %p246, %p247
      %p249 = pneg %p248
      // Predicated region
      $region62: #{conv_layer_forward.2} parent=5 // pred_check
        _
      $region63: #{conv_layer_forward.2} parent=5 // pred_check_branch
        %251 = sbr.rel (%p248) target = $region65
      $region64: #{conv_layer_forward.2} parent=5 // pred_region
        %s252 = ssub.s32 %s11, 1
        %s253 = sand.u32 %s38, 1
        %s254 = sand.u32 %s38, 1
        %s255 = smul.addr %s254, 24
        %s256 = scalar_lea.vmem [#allocation2], %s255
        // Predicated region
        $region66: #{conv_layer_forward.2} parent=64 // pred_check
          %p257 = pneg %p51
        $region67: #{conv_layer_forward.2} parent=64 // pred_check_branch
          %259 = sbr.rel (%p257) target = $region69
        $region68: #{conv_layer_forward.2} parent=64 // pred_region
          _
        $region69: #{conv_layer_forward.2} parent=64 // pred_fallthru
          _
        %s260 = sand.u32 %s38, 1
        %s261 = sand.u32 %s38, 1
        %s262 = smul.addr %s261, 24
        %s263 = scalar_lea.vmem [#allocation2], %s262
        %p264 = pneg %p51
        %p265 = pneg %p48
        %p266 = pneg %p72
        %p267 = pneg %p69
        %p268 = pneg %p100
        %p269 = pneg %p97
        %s270 = sand.u32 %s87, 1
        %s271 = sand.u32 %s87, 1
        %s272 = smul.addr %s271, 16
        %s273 = scalar_lea.vmem [#allocation3], %s272
        %p274 = pneg %p126
        %p275 = pneg %p123
        %p276 = scmp.lt.s32.totalorder %s20, 1
        %s277 = scalar_select %p276, %s20, 1
        %s278 = smul.addr %s277, 2
        %s279 = smul.addr %s278, 8
        %s280 = scalar_lea.vmem %s3, %s279
        %p281 = pneg %p152
        %p282 = pneg %p149
        %p283 = scmp.lt.s32.totalorder %s20, 1
        %s284 = scalar_select %p283, %s20, 1
        %s285 = smul.addr %s284, 2
        %s286 = smul.addr %s285, 8
        %s287 = scalar_lea.vmem %s4, %s286
        %p288 = scmp.lt.s32.totalorder %s20, 1
        %s289 = scalar_select %p288, %s20, 1
        %s290 = smul.addr %s289, 2
        %s291 = smul.addr %s290, 8
        %s292 = scalar_lea.vmem %s3, %s291
        %p293 = scmp.lt.s32.totalorder %s20, 1
        %s294 = scalar_select %p293, %s20, 1
        %s295 = smul.addr %s294, 2
        %s296 = smul.addr %s295, 8
        %s297 = scalar_lea.vmem %s4, %s296
        %p299 = scmp.eq.s32.totalorder %s21, 0
        // Predicated region
        $region70: #{conv_layer_forward.2} parent=64 // pred_check
          %p300 = pneg %p299
        $region71: #{conv_layer_forward.2} parent=64 // pred_check_branch
          %302 = sbr.rel (%p300) target = $region73
        $region72: #{conv_layer_forward.2} parent=64 // pred_region
          %vm303 = vcmask 7168
          %304 = vst.msk [vmem:[%s292] sm:$0xff] %vm303, 0.0
          %305 = vst.msk [vmem:[%s292 + $0x8] sm:$0xff] %vm303, 0.0
          %306 = vst.msk [vmem:[%s297] sm:$0xff] %vm303, 0.0
          %307 = vst.msk [vmem:[%s297 + $0x8] sm:$0xff] %vm303, 0.0
        $region73: #{conv_layer_forward.2} parent=64 // pred_fallthru
          _
        %v308 = vld [vmem:[%s1] sm:$0xf]
        %v309 = vld [vmem:[%s1 + $0x4] sm:$0xf]
        %v310 = vld [vmem:[%s256] sm:$0xf]
        %v311 = vld [vmem:[%s256 + $0x4] sm:$0xf]
        %v312 = vld [vmem:[%s256 + $0x8] sm:$0xf]
        %v313 = vld [vmem:[%s256 + $0xc] sm:$0xf]
        %v314 = vld [vmem:[%s256 + $0x10] sm:$0xf]
        %v315 = vld [vmem:[%s256 + $0x14] sm:$0xf]
        %v318 = vunpack.c.l.b16 %v308
        %v319 = vunpack.c.l.b16 %v309
        %v320 = vpack.c.b16 %v319, %v318
        %v327 = vunpack.c.l.b16 %v310
        %v328 = vunpack.c.l.b16 %v311
        %v329 = vunpack.c.l.b16 %v312
        %v330 = vunpack.c.l.b16 %v313
        %v331 = vunpack.c.l.b16 %v314
        %v332 = vunpack.c.l.b16 %v315
        %v333 = vpack.c.b16 %v328, %v327
        %v334 = vpack.c.b16 %v330, %v329
        %v335 = vpack.c.b16 %v332, %v331
        %vm339 = vcmask 392192
        %v341 = vsel %vm339, %v320, 0
        %343 = vmatprep.subr.bf16.mxu0 0
        %344 = vmatpush1.bf16.msra.mxu0 0
        %345 = vmatprep.subr.bf16.mxu0 0
        %346 = vmatpush1.bf16.msra.mxu0 0
        %347 = vmatprep.subr.bf16.mxu0 0
        %348 = vmatpush1.bf16.msra.mxu0 0
        %349 = vmatprep.subr.bf16.mxu0 0
        %350 = vmatpush1.bf16.msra.mxu0 0
        %351 = vmatprep.subr.bf16.mxu0 0
        %352 = vmatpush1.bf16.msra.mxu0 0
        %353 = vmatprep.subr.bf16.mxu0 0
        %354 = vmatpush1.bf16.msra.mxu0 %v335
        %355 = vmatprep.subr.bf16.mxu0 0
        %356 = vmatpush1.bf16.msra.mxu0 %v334
        %357 = vmatprep.subr.bf16.mxu0 0
        %358 = vmatpush1.bf16.msra.mxu0 %v333
        %359 = vmatprep.subr.bf16.mxu0 0
        %360 = vmatpush2.bf16.msra.mxu0 0
        %361 = vmatprep.subr.bf16.mxu0 0
        %362 = vmatpush2.bf16.msra.mxu0 0
        %363 = vmatprep.subr.bf16.mxu0 0
        %364 = vmatpush2.bf16.msra.mxu0 0
        %365 = vmatprep.subr.bf16.mxu0 0
        %366 = vmatpush2.bf16.msra.mxu0 0
        %367 = vmatprep.subr.bf16.mxu0 0
        %368 = vmatpush2.bf16.msra.mxu0 0
        %369 = vmatprep.subr.bf16.mxu0 0
        %370 = vmatpush2.bf16.msra.mxu0 0
        %371 = vmatprep.subr.bf16.mxu0 0
        %372 = vmatpush2.bf16.msra.mxu0 0
        %373 = vmatprep.subr.bf16.mxu0 0
        %374 = vmatpush2.bf16.msra.mxu0 0
        %375 = vmatprep.mubr.bf16.mxu0 0
        %376 = vmatmul.mubr.bf16.gmra.mxu0 %v341
        %v377 = vpop.f32.mrf.mxu0
        %v378 = vadd.f32 0.0, %v377
        %v379 = vpop.f32.mrf.mxu0
        %v380 = vpop.f32.mrf.mxu0
        %v381 = vadd.f32 0.0, %v380
        %v382 = vpop.f32.mrf.mxu0
        %383 = vdwg.mxu0
        %384 = vst [vmem:[%s273] sm:$0xff] %v378
        %385 = vst [vmem:[%s273 + $0x8] sm:$0xff] %v381
        %v386 = vld [vmem:[%s292] sm:$0xff]
        %v387 = vld [vmem:[%s292 + $0x8] sm:$0xff]
        %388 = vadd.xlane.f32.xlu0 %v378
        %v389 = vpop.xlane.xlu0 %388
        %390 = vadd.xlane.f32.xlu0 %v381
        %v391 = vpop.xlane.xlu0 %390
        %v392 = vadd.f32 %v386, %v389
        %v393 = vadd.f32 %v387, %v391
        %vm394 = vcmask 7168
        %395 = vst.msk [vmem:[%s292] sm:$0xff] %vm394, %v392
        %396 = vst.msk [vmem:[%s292 + $0x8] sm:$0xff] %vm394, %v393
        %v397 = vld [vmem:[%s297] sm:$0xff]
        %v398 = vld [vmem:[%s297 + $0x8] sm:$0xff]
        %v399 = vmul.f32 %v378, %v378
        %v400 = vmul.f32 %v381, %v381
        %401 = vadd.xlane.f32.xlu0 %v399
        %v402 = vpop.xlane.xlu0 %401
        %403 = vadd.xlane.f32.xlu0 %v400
        %v404 = vpop.xlane.xlu0 %403
        %v405 = vadd.f32 %v397, %v402
        %v406 = vadd.f32 %v398, %v404
        %407 = vst.msk [vmem:[%s297] sm:$0xff] %vm394, %v405
        %408 = vst.msk [vmem:[%s297 + $0x8] sm:$0xff] %vm394, %v406
        %s409 = sand.u32 %s87, 1
        %s410 = sand.u32 %s87, 1
        %s411 = smul.addr %s410, 16
        %s412 = scalar_lea.vmem [#allocation3], %s411
        %p413 = scmp.lt.s32.totalorder %s20, 1
        %s414 = scalar_select %p413, %s20, 1
        %s415 = smul.addr %s414, 2
        %s416 = smul.addr %s415, 8
        %s417 = scalar_lea.vmem %s3, %s416
        %p418 = scmp.lt.s32.totalorder %s20, 1
        %s419 = scalar_select %p418, %s20, 1
        %s420 = smul.addr %s419, 2
        %s421 = smul.addr %s420, 8
        %s422 = scalar_lea.vmem %s4, %s421
        // Predicated region
        $region74: #{conv_layer_forward.2} parent=64 // pred_check
          %p423 = pneg %p97
        $region75: #{conv_layer_forward.2} parent=64 // pred_check_branch
          %425 = sbr.rel (%p423) target = $region77
        $region76: #{conv_layer_forward.2} parent=64 // pred_region
          %s426 = smul.addr %s20, 4
          %s427 = sadd.s32 %s21, %s426
          %s428 = smul.addr %s427, 8
          %s429 = scalar_lea.vmem %s2, %s428
          // Predicated region
          $region78: #{conv_layer_forward.2} parent=76 // pred_check
            _
          $region79: #{conv_layer_forward.2} parent=76 // pred_check_branch
            %431 = sbr.rel (0) target = $region81
          $region80: #{conv_layer_forward.2} parent=76 // pred_region
            // Predicated region
            $region82: #{conv_layer_forward.2} parent=80 // pred_check
              _
            $region83: #{conv_layer_forward.2} parent=80 // pred_check_branch
              %433 = sbr.rel (0) target = $region85
            $region84: #{conv_layer_forward.2} parent=80 // pred_region
              // Predicated region
              $region97: #{conv_layer_forward.2} parent=84 // pred_check
                _
              $region98: #{conv_layer_forward.2} parent=84 // pred_check_branch
                %451 = sbr.rel (0) target = $region100
              $region99: #{conv_layer_forward.2} parent=84 // pred_region
                loop: start=0, step=1, limit=1
                $region101: #{conv_layer_forward.2} parent=99 // loop_pre_header
                  _
                $region102: #{conv_layer_forward.2} parent=99 // loop_header
                  %s453 = sphi 0, %s457
                  %p454 = scmp.ge.s32.totalorder %s453, 1
                  %s458 = sphi %s412, %s412
                  %s459 = sphi %s429, %s429
                $region103: #{conv_layer_forward.2} parent=99 // loop_header_branch
                  %456 = sbr.rel (%p454) target = $region107
                $region104: #{conv_layer_forward.2} parent=99 // loop_body
                  %v460 = vld [vmem:[%s458] sm:$0xff]
                  %461 = vst [vmem:[%s459] sm:$0xff] %v460
                  %v462 = vld [vmem:[%s458 + $0x8] sm:$0xff]
                  %463 = vst [vmem:[%s459 + $0x10] sm:$0xff] %v462
                $region105: #{conv_layer_forward.2} parent=99 // loop_footer
                  %s457 = sadd.s32 1, %s453
                $region106: #{conv_layer_forward.2} parent=99 // loop_footer_branch
                  %452 = sbr.rel target = $region102
                $region107: #{conv_layer_forward.2} parent=99 // loop_exit
                  _
              $region100: #{conv_layer_forward.2} parent=84 // pred_fallthru
                _
              // Predicated region
              $region108: #{conv_layer_forward.2} parent=84 // pred_check
                _
              $region109: #{conv_layer_forward.2} parent=84 // pred_check_branch
                %465 = sbr.rel target = $region111
              $region110: #{conv_layer_forward.2} parent=84 // pred_region
                _
              $region111: #{conv_layer_forward.2} parent=84 // pred_fallthru
                _
            $region85: #{conv_layer_forward.2} parent=80 // pred_fallthru
              _
            // Predicated region
            $region86: #{conv_layer_forward.2} parent=80 // pred_check
              _
            $region87: #{conv_layer_forward.2} parent=80 // pred_check_branch
              %435 = sbr.rel target = $region89
            $region88: #{conv_layer_forward.2} parent=80 // pred_region
              %s437 = ssub.s32 256, 1
              loop: start=0, step=1, limit=1
              $region90: #{conv_layer_forward.2} parent=88 // loop_pre_header
                _
              $region91: #{conv_layer_forward.2} parent=88 // loop_header
                %s439 = sphi 0, %s443
                %p440 = scmp.ge.s32.totalorder %s439, 1
                %s444 = sphi %s412, %s412
                %s445 = sphi %s429, %s429
              $region92: #{conv_layer_forward.2} parent=88 // loop_header_branch
                %442 = sbr.rel (%p440) target = $region96
              $region93: #{conv_layer_forward.2} parent=88 // loop_body
                %v446 = vld [vmem:[%s444] sm:%s437]
                %447 = vst [vmem:[%s445] sm:%s437] %v446
                %v448 = vld [vmem:[%s444 + $0x8] sm:%s437]
                %449 = vst [vmem:[%s445 + $0x10] sm:%s437] %v448
              $region94: #{conv_layer_forward.2} parent=88 // loop_footer
                %s443 = sadd.s32 1, %s439
              $region95: #{conv_layer_forward.2} parent=88 // loop_footer_branch
                %438 = sbr.rel target = $region91
              $region96: #{conv_layer_forward.2} parent=88 // loop_exit
                _
            $region89: #{conv_layer_forward.2} parent=80 // pred_fallthru
              _
          $region81: #{conv_layer_forward.2} parent=76 // pred_fallthru
            _
          %466 = vnop
        $region77: #{conv_layer_forward.2} parent=64 // pred_fallthru
          _
        // Predicated region
        $region112: #{conv_layer_forward.2} parent=64 // pred_check
          %p467 = pneg %p123
        $region113: #{conv_layer_forward.2} parent=64 // pred_check_branch
          %469 = sbr.rel (%p467) target = $region115
        $region114: #{conv_layer_forward.2} parent=64 // pred_region
          _
        $region115: #{conv_layer_forward.2} parent=64 // pred_fallthru
          _
        // Predicated region
        $region116: #{conv_layer_forward.2} parent=64 // pred_check
          %p470 = pneg %p149
        $region117: #{conv_layer_forward.2} parent=64 // pred_check_branch
          %472 = sbr.rel (%p470) target = $region119
        $region118: #{conv_layer_forward.2} parent=64 // pred_region
          _
        $region119: #{conv_layer_forward.2} parent=64 // pred_fallthru
          _
      $region65: #{conv_layer_forward.2} parent=5 // pred_fallthru
        _
      %p473 = scmp.le.s32.totalorder 2, %s11
      // Predicated region
      $region120: #{conv_layer_forward.2} parent=5 // pred_check
        %p474 = pneg %p473
      $region121: #{conv_layer_forward.2} parent=5 // pred_check_branch
        %476 = sbr.rel (%p474) target = $region123
      $region122: #{conv_layer_forward.2} parent=5 // pred_region
        %s477 = ssub.s32 %s11, 2
        // Predicated region
        $region124: #{conv_layer_forward.2} parent=122 // pred_check
          %p478 = pneg %p103
        $region125: #{conv_layer_forward.2} parent=122 // pred_check_branch
          %480 = sbr.rel (%p478) target = $region127
        $region126: #{conv_layer_forward.2} parent=122 // pred_region
          %s481 = sand.u32 %s88, 1
          %s482 = sand.u32 %s88, 1
          %s483 = smul.addr %s482, 16
          %s484 = scalar_lea.vmem [#allocation3], %s483
        $region127: #{conv_layer_forward.2} parent=122 // pred_fallthru
          _
        // Predicated region
        $region128: #{conv_layer_forward.2} parent=122 // pred_check
          %p485 = pneg %p129
        $region129: #{conv_layer_forward.2} parent=122 // pred_check_branch
          %487 = sbr.rel (%p485) target = $region131
        $region130: #{conv_layer_forward.2} parent=122 // pred_region
          %p488 = scmp.lt.s32.totalorder %s22, 1
          %s489 = scalar_select %p488, %s22, 1
          %s490 = smul.addr %s489, 2
          %s491 = smul.addr %s490, 8
          %s492 = scalar_lea.vmem %s3, %s491
        $region131: #{conv_layer_forward.2} parent=122 // pred_fallthru
          _
        // Predicated region
        $region132: #{conv_layer_forward.2} parent=122 // pred_check
          %p493 = pneg %p155
        $region133: #{conv_layer_forward.2} parent=122 // pred_check_branch
          %495 = sbr.rel (%p493) target = $region135
        $region134: #{conv_layer_forward.2} parent=122 // pred_region
          %p496 = scmp.lt.s32.totalorder %s22, 1
          %s497 = scalar_select %p496, %s22, 1
          %s498 = smul.addr %s497, 2
          %s499 = smul.addr %s498, 8
          %s500 = scalar_lea.vmem %s4, %s499
        $region135: #{conv_layer_forward.2} parent=122 // pred_fallthru
          _
      $region123: #{conv_layer_forward.2} parent=5 // pred_fallthru
        _
    $region6: #{conv_layer_forward.2} parent=1 // loop_footer
      %s15 = sadd.s32 1, %s11
    $region7: #{conv_layer_forward.2} parent=1 // loop_footer_branch
      %10 = sbr.rel target = $region3
    $region8: #{conv_layer_forward.2} parent=1 // loop_exit
      _

</llo_original>
